<compile_context>
chip_gen: v5e
topology: v5e:2x2
jax: 0.10.0
libtpu: 0.0.40
codegen_flags: <defaults>
</compile_context>

<pallas_src>
import functools
import math

import jax
import jax.numpy as jnp
from jax.experimental import pallas as pl
from jax.experimental.pallas import tpu as pltpu

LANE = 128      # hidden dims zero-padded to the TPU lane width


def _round_up(n, m):
    return pl.cdiv(n, m) * m


def qnetwork_kernel(s_ref, a_ref, w1s_ref, w1a_ref, b1_ref, w2_ref, b2_ref,
                    w3r_ref, b3_ref, o_ref, *, compute_dtype):
    """One batch tile of the DDPG critic MLP.

    h1 = relu(state @ W1_s + action @ W1_a + b1)   # concat fused away
    h2 = relu(h1 @ W2 + b2)
    q  = W3_row @ h2^T + b3                         # (1, tm) lane-dense output
    """
    # Only the MXU operands are in compute_dtype; all elementwise math is f32.
    s = s_ref[...].astype(compute_dtype)
    a = a_ref[...].astype(compute_dtype)

    # Layer 1: two MXU pushes (K=state_size and K=action_size), f32 accumulation.
    # TODO(synk): on v7x an explicit MRB accumulate could fuse the two partials.
    h1 = (jnp.dot(s, w1s_ref[...], preferred_element_type=jnp.float32)
          + jnp.dot(a, w1a_ref[...], preferred_element_type=jnp.float32)
          + b1_ref[...])
    h1 = jnp.maximum(h1, 0.0)                      # relu in f32 (VPU)

    # Layer 2.
    h2 = jnp.dot(h1.astype(compute_dtype), w2_ref[...],
                 preferred_element_type=jnp.float32) + b2_ref[...]
    h2 = jnp.maximum(h2, 0.0)

    # Layer 3 (H2 -> 1): contract over the padded hidden dim of both operands so
    # the per-tile result is a lane-dense (1, tm) row (unmasked stores).
    q = jax.lax.dot_general(
        w3r_ref[...], h2.astype(compute_dtype),
        dimension_numbers=(((1,), (1,)), ((), ())),
        preferred_element_type=jnp.float32)
    o_ref[...] = q + b3_ref[...]


def init_params(key, state_size, action_size, fc_1=64, fc_2=64, leak=0.01):
    """Matches QNetwork.__init__ / reset_parameters semantics.

    - layer1/layer2 weights: kaiming_normal_(a=leak, mode='fan_in')
    - layer3 weight: uniform(-3e-4, 3e-4)
    - biases: PyTorch Linear default uniform(-1/sqrt(fan_in), 1/sqrt(fan_in))
    Weights are stored (in_features, out_features) for the x @ W convention.
    """
    in1 = state_size + action_size
    k = jax.random.split(key, 6)

    def kaiming_std(fan_in):
        return math.sqrt(2.0 / (1.0 + leak * leak)) / math.sqrt(fan_in)

    w1 = jax.random.normal(k[0], (in1, fc_1), jnp.float32) * kaiming_std(in1)
    b1 = jax.random.uniform(k[1], (fc_1,), jnp.float32,
                            -1.0 / math.sqrt(in1), 1.0 / math.sqrt(in1))
    w2 = jax.random.normal(k[2], (fc_1, fc_2), jnp.float32) * kaiming_std(fc_1)
    b2 = jax.random.uniform(k[3], (fc_2,), jnp.float32,
                            -1.0 / math.sqrt(fc_1), 1.0 / math.sqrt(fc_1))
    w3 = jax.random.uniform(k[4], (fc_2, 1), jnp.float32, -3e-4, 3e-4)
    b3 = jax.random.uniform(k[5], (1,), jnp.float32,
                            -1.0 / math.sqrt(fc_2), 1.0 / math.sqrt(fc_2))
    return (w1, b1, w2, b2, w3, b3)


def prepare_params(params, state_size, action_size,
                   compute_dtype=jnp.bfloat16):
    """One-time weight preprocessing (NOT per-forward):
      * split W1 into state/action halves (fuses the concat away)
      * zero-pad hidden dims to 128 lanes (mathematically exact)
      * pre-cast MXU operands to compute_dtype (casts hoisted out of the kernel)
      * keep biases in f32 (added to the f32 accumulators)
    """
    w1, b1, w2, b2, w3, b3 = params
    f1, f2 = w1.shape[1], w2.shape[1]
    h1p, h2p = _round_up(f1, LANE), _round_up(f2, LANE)

    w1s = jnp.pad(w1[:state_size, :], ((0, 0), (0, h1p - f1))).astype(compute_dtype)
    w1a = jnp.pad(w1[state_size:, :], ((0, 0), (0, h1p - f1))).astype(compute_dtype)
    b1p = jnp.pad(b1, (0, h1p - f1)).reshape(1, h1p)                       # f32
    w2p = jnp.pad(w2, ((0, h1p - f1), (0, h2p - f2))).astype(compute_dtype)
    b2p = jnp.pad(b2, (0, h2p - f2)).reshape(1, h2p)                       # f32
    w3r = jnp.pad(w3[:, 0], (0, h2p - f2)).reshape(1, h2p).astype(compute_dtype)
    b3p = b3.reshape(1, 1)                                                 # f32
    return (w1s, w1a, b1p, w2p, b2p, w3r, b3p)


def _choose_tile(batch, block_b):
    """Pick the batch-tile height.

    * tiny batches (<=128 rows): one full tile (no grid overhead).
    * otherwise: tiles are multiples of 128 (so every (1, tm) output block is
      lane-dense), capped at block_b rows, and split into >=2 grid steps so the
      "parallel" grid axis shards across v7x's two TensorCores.
    """
    if batch <= 128:
        return _round_up(batch, 16)          # 16: bf16-safe sublane multiple
    b128 = _round_up(batch, 128)
    num_tiles = max(2, pl.cdiv(b128, _round_up(block_b, 128)))
    return _round_up(pl.cdiv(b128, num_tiles), 128)


def qnetwork_forward(state, action, prepared_params, *, block_b=2048,
                     vmem_limit_bytes=32 * 1024 * 1024):
    """Full QNetwork forward in a single pallas_call.

    Batch is tiled over a 1-D "parallel" grid; all weights use constant
    index_maps so they stay VMEM-resident across grid steps.  Q values are
    emitted as lane-dense (1, tm) rows and reshaped to (B, 1) here.
    """
    w1s, w1a, b1, w2, b2, w3r, b3 = prepared_params
    compute_dtype = w1s.dtype
    B = state.shape[0]
    S, H1 = w1s.shape
    A = w1a.shape[0]
    H2 = w2.shape[1]

    tm = _choose_tile(B, block_b)
    b_pad = _round_up(B, tm)
    num_tiles = b_pad // tm
    if b_pad != B:
        state = jnp.pad(state, ((0, b_pad - B), (0, 0)))
        action = jnp.pad(action, ((0, b_pad - B), (0, 0)))

    kernel = functools.partial(qnetwork_kernel, compute_dtype=compute_dtype)
    const = lambda i: (0, 0)

    out = pl.pallas_call(
        kernel,
        out_shape=jax.ShapeDtypeStruct((1, b_pad), jnp.float32),
        grid=(num_tiles,),
        in_specs=[
            pl.BlockSpec((tm, S), lambda i: (i, 0)),   # state tile
            pl.BlockSpec((tm, A), lambda i: (i, 0)),   # action tile
            pl.BlockSpec((S, H1), const),              # W1_state  (resident)
            pl.BlockSpec((A, H1), const),              # W1_action (resident)
            pl.BlockSpec((1, H1), const),              # b1
            pl.BlockSpec((H1, H2), const),             # W2
            pl.BlockSpec((1, H2), const),              # b2
            pl.BlockSpec((1, H2), const),              # W3 row
            pl.BlockSpec((1, 1), const),               # b3
        ],
        out_specs=pl.BlockSpec((1, tm), lambda i: (0, i)),
        compiler_params=pltpu.CompilerParams(
            dimension_semantics=("parallel",),
            vmem_limit_bytes=vmem_limit_bytes),
    )(state, action, w1s, w1a, b1, w2, b2, w3r, b3)

    return out[0, :B].reshape(B, 1)


def reference_forward(state, action, params):
    w1, b1, w2, b2, w3, b3 = params
    xu = jnp.concatenate([state, action], axis=1)
    h1 = jnp.maximum(xu @ w1 + b1, 0.0)
    h2 = jnp.maximum(h1 @ w2 + b2, 0.0)
    return h2 @ w3 + b3


if __name__ == "__main__":
    key = jax.random.PRNGKey(0)
    batch, state_size, action_size = 8, 16, 8

    k_s, k_a, k_p, k_s2, k_a2 = jax.random.split(key, 5)
    state = jax.random.normal(k_s, (batch, state_size), jnp.float32)
    action = jax.random.normal(k_a, (batch, action_size), jnp.float32)

    params = init_params(k_p, state_size, action_size)
    ref = reference_forward(state, action, params)

    # f32 path: matches the reference up to f32 accumulation-order noise.
    prep_f32 = prepare_params(params, state_size, action_size, jnp.float32)
    out_f32 = jax.block_until_ready(qnetwork_forward(state, action, prep_f32))
    assert out_f32.shape == (batch, 1)
    assert jnp.allclose(out_f32, ref, atol=1e-4, rtol=1e-4)

    # Default bf16 MXU path (f32 accumulation, f32 elementwise).
    prep_bf16 = prepare_params(params, state_size, action_size)  # bf16 weights
    out_bf16 = jax.block_until_ready(qnetwork_forward(state, action, prep_bf16))
    assert out_bf16.shape == (batch, 1)
    assert jnp.allclose(out_bf16, ref, atol=2e-2, rtol=2e-2)

    # Larger batch: exercises the >=2-step tiled path (v7x megacore split),
    # lane-dense (1, tm) output blocks, and batch-padding slice-off.
    B2 = 384
    state2 = jax.random.normal(k_s2, (B2, state_size), jnp.float32)
    action2 = jax.random.normal(k_a2, (B2, action_size), jnp.float32)
    ref2 = reference_forward(state2, action2, params)
    out2 = jax.block_until_ready(qnetwork_forward(state2, action2, prep_f32))
    assert out2.shape == (B2, 1)
    assert jnp.allclose(out2, ref2, atol=1e-4, rtol=1e-4)

    print("KERNEL_OK")
</pallas_src>

<mosaic_0001>
module attributes {stable_mosaic.version = 11 : i64} {
  func.func @qnetwork_kernel(%arg0: i32, %arg1: memref<16x16xf32, #tpu.memory_space<vmem>>, %arg2: memref<16x8xf32, #tpu.memory_space<vmem>>, %arg3: memref<16x128xf32, #tpu.memory_space<vmem>>, %arg4: memref<8x128xf32, #tpu.memory_space<vmem>>, %arg5: memref<1x128xf32, #tpu.memory_space<vmem>>, %arg6: memref<128x128xf32, #tpu.memory_space<vmem>>, %arg7: memref<1x128xf32, #tpu.memory_space<vmem>>, %arg8: memref<1x128xf32, #tpu.memory_space<vmem>>, %arg9: memref<1x1xf32, #tpu.memory_space<vmem>>, %arg10: memref<1x16xf32, #tpu.memory_space<vmem>>) attributes {dimension_semantics = [#tpu.dimension_semantics<parallel>], iteration_bounds = array<i64: 1>, scalar_prefetch = 0 : i64, scratch_operands = 0 : i64, tpu.core_type = #tpu.core_type<tc>, window_params = [{transform_indices = @transform_0, window_bounds = array<i64: 16, 16>}, {transform_indices = @transform_1, window_bounds = array<i64: 16, 8>}, {pipeline_mode = #tpu.pipeline_mode<synchronous>, transform_indices = @transform_2, window_bounds = array<i64: 16, 128>}, {pipeline_mode = #tpu.pipeline_mode<synchronous>, transform_indices = @transform_3, window_bounds = array<i64: 8, 128>}, {pipeline_mode = #tpu.pipeline_mode<synchronous>, transform_indices = @transform_4, window_bounds = array<i64: 1, 128>}, {pipeline_mode = #tpu.pipeline_mode<synchronous>, transform_indices = @transform_5, window_bounds = array<i64: 128, 128>}, {pipeline_mode = #tpu.pipeline_mode<synchronous>, transform_indices = @transform_6, window_bounds = array<i64: 1, 128>}, {pipeline_mode = #tpu.pipeline_mode<synchronous>, transform_indices = @transform_7, window_bounds = array<i64: 1, 128>}, {pipeline_mode = #tpu.pipeline_mode<synchronous>, transform_indices = @transform_8, window_bounds = array<i64: 1, 1>}, {transform_indices = @transform_9, window_bounds = array<i64: 1, 16>}]} {
    %c0 = arith.constant 0 : index
    %c0_0 = arith.constant 0 : index
    %0 = vector.load %arg1[%c0, %c0_0] : memref<16x16xf32, #tpu.memory_space<vmem>>, vector<16x16xf32>
    %c0_1 = arith.constant 0 : index
    %c0_2 = arith.constant 0 : index
    %1 = vector.load %arg2[%c0_1, %c0_2] : memref<16x8xf32, #tpu.memory_space<vmem>>, vector<16x8xf32>
    %c0_3 = arith.constant 0 : index
    %c0_4 = arith.constant 0 : index
    %2 = vector.load %arg3[%c0_3, %c0_4] : memref<16x128xf32, #tpu.memory_space<vmem>>, vector<16x128xf32>
    %cst = arith.constant dense<0.000000e+00> : vector<16x128xf32>
    %3 = tpu.matmul %0, %2, %cst {dimension_numbers = #tpu.dot_dimension_numbers<[1], [0], [0], [1], [0, 0, 1, 1], [], []>} : vector<16x16xf32>, vector<16x128xf32>, vector<16x128xf32> -> vector<16x128xf32>
    %c0_5 = arith.constant 0 : index
    %c0_6 = arith.constant 0 : index
    %4 = vector.load %arg4[%c0_5, %c0_6] : memref<8x128xf32, #tpu.memory_space<vmem>>, vector<8x128xf32>
    %cst_7 = arith.constant dense<0.000000e+00> : vector<16x128xf32>
    %5 = tpu.matmul %1, %4, %cst_7 {dimension_numbers = #tpu.dot_dimension_numbers<[1], [0], [0], [1], [0, 0, 1, 1], [], []>} : vector<16x8xf32>, vector<8x128xf32>, vector<16x128xf32> -> vector<16x128xf32>
    %6 = arith.addf %3, %5 : vector<16x128xf32>
    %c0_8 = arith.constant 0 : index
    %c0_9 = arith.constant 0 : index
    %7 = vector.load %arg5[%c0_8, %c0_9] : memref<1x128xf32, #tpu.memory_space<vmem>>, vector<1x128xf32>
    %8 = vector.broadcast %7 : vector<1x128xf32> to vector<16x128xf32>
    %9 = arith.addf %6, %8 : vector<16x128xf32>
    %cst_10 = arith.constant 0.000000e+00 : f32
    %10 = vector.broadcast %cst_10 : f32 to vector<16x128xf32>
    %11 = arith.maximumf %9, %10 : vector<16x128xf32>
    %c0_11 = arith.constant 0 : index
    %c0_12 = arith.constant 0 : index
    %12 = vector.load %arg6[%c0_11, %c0_12] : memref<128x128xf32, #tpu.memory_space<vmem>>, vector<128x128xf32>
    %cst_13 = arith.constant dense<0.000000e+00> : vector<16x128xf32>
    %13 = tpu.matmul %11, %12, %cst_13 {dimension_numbers = #tpu.dot_dimension_numbers<[1], [0], [0], [1], [0, 0, 1, 1], [], []>} : vector<16x128xf32>, vector<128x128xf32>, vector<16x128xf32> -> vector<16x128xf32>
    %c0_14 = arith.constant 0 : index
    %c0_15 = arith.constant 0 : index
    %14 = vector.load %arg7[%c0_14, %c0_15] : memref<1x128xf32, #tpu.memory_space<vmem>>, vector<1x128xf32>
    %15 = vector.broadcast %14 : vector<1x128xf32> to vector<16x128xf32>
    %16 = arith.addf %13, %15 : vector<16x128xf32>
    %cst_16 = arith.constant 0.000000e+00 : f32
    %17 = vector.broadcast %cst_16 : f32 to vector<16x128xf32>
    %18 = arith.maximumf %16, %17 : vector<16x128xf32>
    %c0_17 = arith.constant 0 : index
    %c0_18 = arith.constant 0 : index
    %19 = vector.load %arg8[%c0_17, %c0_18] : memref<1x128xf32, #tpu.memory_space<vmem>>, vector<1x128xf32>
    %cst_19 = arith.constant dense<0.000000e+00> : vector<1x16xf32>
    %20 = tpu.matmul %19, %18, %cst_19 {dimension_numbers = #tpu.dot_dimension_numbers<[1], [1], [0], [0], [0, 0, 1, 0], [], []>} : vector<1x128xf32>, vector<16x128xf32>, vector<1x16xf32> -> vector<1x16xf32>
    %c0_20 = arith.constant 0 : index
    %c0_21 = arith.constant 0 : index
    %21 = vector.load %arg9[%c0_20, %c0_21] : memref<1x1xf32, #tpu.memory_space<vmem>>, vector<1x1xf32>
    %22 = vector.broadcast %21 : vector<1x1xf32> to vector<1x16xf32>
    %23 = arith.addf %20, %22 : vector<1x16xf32>
    %c0_22 = arith.constant 0 : index
    %c0_23 = arith.constant 0 : index
    %24 = vector.load %arg10[%c0_22, %c0_23] : memref<1x16xf32, #tpu.memory_space<vmem>>, vector<1x16xf32>
    tpu.vector_store %arg10[%c0_22, %c0_23], %23 {strides = array<i32>} : memref<1x16xf32, #tpu.memory_space<vmem>>, vector<1x16xf32>,
    return
  }
  func.func @transform_0(%arg0: i32) -> (i32, i32) {
    %c0_i32 = arith.constant 0 : i32
    %c0_i32_0 = arith.constant 0 : i32
    return %arg0, %c0_i32 : i32, i32
  }
  func.func @transform_1(%arg0: i32) -> (i32, i32) {
    %c0_i32 = arith.constant 0 : i32
    %c0_i32_0 = arith.constant 0 : i32
    return %arg0, %c0_i32 : i32, i32
  }
  func.func @transform_2(%arg0: i32) -> (i32, i32) {
    %c0_i32 = arith.constant 0 : i32
    %c0_i32_0 = arith.constant 0 : i32
    %c0_i32_1 = arith.constant 0 : i32
    return %c0_i32, %c0_i32_0 : i32, i32
  }
  func.func @transform_3(%arg0: i32) -> (i32, i32) {
    %c0_i32 = arith.constant 0 : i32
    %c0_i32_0 = arith.constant 0 : i32
    %c0_i32_1 = arith.constant 0 : i32
    return %c0_i32, %c0_i32_0 : i32, i32
  }
  func.func @transform_4(%arg0: i32) -> (i32, i32) {
    %c0_i32 = arith.constant 0 : i32
    %c0_i32_0 = arith.constant 0 : i32
    %c0_i32_1 = arith.constant 0 : i32
    return %c0_i32, %c0_i32_0 : i32, i32
  }
  func.func @transform_5(%arg0: i32) -> (i32, i32) {
    %c0_i32 = arith.constant 0 : i32
    %c0_i32_0 = arith.constant 0 : i32
    %c0_i32_1 = arith.constant 0 : i32
    return %c0_i32, %c0_i32_0 : i32, i32
  }
  func.func @transform_6(%arg0: i32) -> (i32, i32) {
    %c0_i32 = arith.constant 0 : i32
    %c0_i32_0 = arith.constant 0 : i32
    %c0_i32_1 = arith.constant 0 : i32
    return %c0_i32, %c0_i32_0 : i32, i32
  }
  func.func @transform_7(%arg0: i32) -> (i32, i32) {
    %c0_i32 = arith.constant 0 : i32
    %c0_i32_0 = arith.constant 0 : i32
    %c0_i32_1 = arith.constant 0 : i32
    return %c0_i32, %c0_i32_0 : i32, i32
  }
  func.func @transform_8(%arg0: i32) -> (i32, i32) {
    %c0_i32 = arith.constant 0 : i32
    %c0_i32_0 = arith.constant 0 : i32
    %c0_i32_1 = arith.constant 0 : i32
    return %c0_i32, %c0_i32_0 : i32, i32
  }
  func.func @transform_9(%arg0: i32) -> (i32, i32) {
    %c0_i32 = arith.constant 0 : i32
    %c0_i32_0 = arith.constant 0 : i32
    return %c0_i32, %arg0 : i32, i32
  }
}

</mosaic_0001>

<llo_original>
// kernel: tpu_custom_call.1
$region0: #{tpu_custom_call.1}
  #allocation0 [shape = 'u32[]', space=smem, size = 0x4, offset = 0x4, fixed_abs, tag = 'smem constant byte address 0x4 - core index']
  #allocation1 [shape = 'u32[72,128]{1,0:T(1,128)}', space=vmem, size = 0x9000, scoped, tag = 'internal scratch']
  #allocation2 [shape = 'f32[1,1]{1,0:T(1,128)S(1)}', space=vmem, size = 0x200, scoped, tag = 'scoped memory for tpu_custom_call.1']
  %s0 = inlined_call_operand.vmem [shape: f32[16,16], index: 0, kind: input, shape index: {}]
  %s1 = inlined_call_operand.vmem [shape: f32[16,8], index: 1, kind: input, shape index: {}]
  %s2 = inlined_call_operand.hbm [shape: f32[16,128], index: 2, kind: input, shape index: {}]
  %s3 = inlined_call_operand.vmem [shape: f32[8,128], index: 3, kind: input, shape index: {}]
  %s4 = inlined_call_operand.vmem [shape: f32[1,128], index: 4, kind: input, shape index: {}]
  %s5 = inlined_call_operand.hbm [shape: f32[128,128], index: 5, kind: input, shape index: {}]
  %s6 = inlined_call_operand.vmem [shape: f32[1,128], index: 6, kind: input, shape index: {}]
  %s7 = inlined_call_operand.vmem [shape: f32[1,128], index: 7, kind: input, shape index: {}]
  %s8 = inlined_call_operand.<no memory space> [shape: f32[1,1], index: 8, kind: input, shape index: {}]
  %s9 = inlined_call_operand.hbm [shape: f32[1,16], index: 9, kind: output, shape index: {}]
  %s10 = sld [smem:[#allocation0]]
  $region54: #{tpu_custom_call.1} parent=0
    _
  %s12 = ssub.s32 1, %s10
  %s13 = scalar_select 0, %s12, %s10
  %v14 = vstv %s8
  %15 = vst [vmem:[#allocation2] sm:$0x1] %v14
  $region1: #{tpu_custom_call.1} parent=0
    #allocation3 [shape = 'u8[8192]{0}', space=vmem, size = 0x2000, scoped, tag = 'input window, operand 2, single buffered']
    #allocation4 [shape = 's32[1]{0}', space=sflag, size = 0x4, scoped, tag = 'scoped memory for tpu_custom_call.1']
    #allocation5 [shape = 's32[1]{0}', space=sflag, size = 0x4, scoped, tag = 'scoped memory for tpu_custom_call.1']
    #allocation6 [shape = 'u8[65536]{0}', space=vmem, size = 0x10000, scoped, tag = 'input window, operand 5, single buffered']
    #allocation7 [shape = 's32[1]{0}', space=sflag, size = 0x4, scoped, tag = 'scoped memory for tpu_custom_call.1']
    #allocation8 [shape = 'u8[512]{0}', space=vmem, size = 0x400, scoped, tag = 'output window, operand 0, single buffered']
    %16 = vsyncpa [#allocation4], 0
    %17 = vsyncpa [#allocation7], 0
    %18 = vsyncpa [#allocation5], 0
    // Predicated region
    $region2: #{tpu_custom_call.1} parent=1 // pred_check
      _
    $region3: #{tpu_custom_call.1} parent=1 // pred_check_branch
      %20 = sbr.rel (0) target = $region5
    $region4: #{tpu_custom_call.1} parent=1 // pred_region
      _
    $region5: #{tpu_custom_call.1} parent=1 // pred_fallthru
      _
    // Predicated region
    $region6: #{tpu_custom_call.1} parent=1 // pred_check
      _
    $region7: #{tpu_custom_call.1} parent=1 // pred_check_branch
      %22 = sbr.rel (0) target = $region9
    $region8: #{tpu_custom_call.1} parent=1 // pred_region
      _
    $region9: #{tpu_custom_call.1} parent=1 // pred_fallthru
      _
    // Predicated region
    $region10: #{tpu_custom_call.1} parent=1 // pred_check
      _
    $region11: #{tpu_custom_call.1} parent=1 // pred_check_branch
      %24 = sbr.rel (0) target = $region13
    $region12: #{tpu_custom_call.1} parent=1 // pred_region
      %26 = vsyncadd [#allocation4], 0
      %s27 = sshll.u32 %s2, 4
      %s28 = int_to_ptr.hbm [resolvable:$true] %s27
      %s29 = sshll.u32 [#allocation3], 4
      %s30 = int_to_ptr.vmem [resolvable:$true] %s29
      %35 = dma.hbm_to_vmem [thread:$0]  %s28, 256, %s30, [#allocation4], 128, 128, 8
    $region13: #{tpu_custom_call.1} parent=1 // pred_fallthru
      _
    // Predicated region
    $region14: #{tpu_custom_call.1} parent=1 // pred_check
      _
    $region15: #{tpu_custom_call.1} parent=1 // pred_check_branch
      %37 = sbr.rel (0) target = $region17
    $region16: #{tpu_custom_call.1} parent=1 // pred_region
      _
    $region17: #{tpu_custom_call.1} parent=1 // pred_fallthru
      _
    // Predicated region
    $region18: #{tpu_custom_call.1} parent=1 // pred_check
      _
    $region19: #{tpu_custom_call.1} parent=1 // pred_check_branch
      %39 = sbr.rel (0) target = $region21
    $region20: #{tpu_custom_call.1} parent=1 // pred_region
      _
    $region21: #{tpu_custom_call.1} parent=1 // pred_fallthru
      _
    // Predicated region
    $region22: #{tpu_custom_call.1} parent=1 // pred_check
      _
    $region23: #{tpu_custom_call.1} parent=1 // pred_check_branch
      %41 = sbr.rel (0) target = $region25
    $region24: #{tpu_custom_call.1} parent=1 // pred_region
      %43 = vsyncadd [#allocation7], 0
      %s44 = sshll.u32 %s5, 4
      %s45 = int_to_ptr.hbm [resolvable:$true] %s44
      %s46 = sshll.u32 [#allocation6], 4
      %s47 = int_to_ptr.vmem [resolvable:$true] %s46
      %52 = dma.hbm_to_vmem [thread:$0]  %s45, 2048, %s47, [#allocation7], 128, 128, 8
    $region25: #{tpu_custom_call.1} parent=1 // pred_fallthru
      _
    // Predicated region
    $region26: #{tpu_custom_call.1} parent=1 // pred_check
      _
    $region27: #{tpu_custom_call.1} parent=1 // pred_check_branch
      %54 = sbr.rel (0) target = $region29
    $region28: #{tpu_custom_call.1} parent=1 // pred_region
      _
    $region29: #{tpu_custom_call.1} parent=1 // pred_fallthru
      _
    // Predicated region
    $region30: #{tpu_custom_call.1} parent=1 // pred_check
      _
    $region31: #{tpu_custom_call.1} parent=1 // pred_check_branch
      %56 = sbr.rel (0) target = $region33
    $region32: #{tpu_custom_call.1} parent=1 // pred_region
      _
    $region33: #{tpu_custom_call.1} parent=1 // pred_fallthru
      _
    // Predicated region
    $region34: #{tpu_custom_call.1} parent=1 // pred_check
      _
    $region35: #{tpu_custom_call.1} parent=1 // pred_check_branch
      %58 = sbr.rel (0) target = $region37
    $region36: #{tpu_custom_call.1} parent=1 // pred_region
      _
    $region37: #{tpu_custom_call.1} parent=1 // pred_fallthru
      _
    // Predicated region
    $region38: #{tpu_custom_call.1} parent=1 // pred_check
      _
    $region39: #{tpu_custom_call.1} parent=1 // pred_check_branch
      %60 = sbr.rel (0) target = $region41
    $region40: #{tpu_custom_call.1} parent=1 // pred_region
      %62 = dma.done [#allocation4], 256
    $region41: #{tpu_custom_call.1} parent=1 // pred_fallthru
      _
    // Predicated region
    $region42: #{tpu_custom_call.1} parent=1 // pred_check
      _
    $region43: #{tpu_custom_call.1} parent=1 // pred_check_branch
      %64 = sbr.rel (0) target = $region45
    $region44: #{tpu_custom_call.1} parent=1 // pred_region
      %66 = dma.done [#allocation7], 2048
    $region45: #{tpu_custom_call.1} parent=1 // pred_fallthru
      _
    %v67 = vld [vmem:[%s0] sm:$0xff]
    %v68 = vld [vmem:[%s0 + $0x8] sm:$0xff]
    %v69 = vld [vmem:[%s1] sm:$0xff]
    %v70 = vld [vmem:[%s1 + $0x8] sm:$0xff]
    %v71 = vld [vmem:[#allocation3] sm:$0xff]
    %v72 = vld [vmem:[#allocation3 + $0x8] sm:$0xff]
    %v73 = vld [vmem:[%s3] sm:$0xff]
    %vm74 = vcmask 64512
    %v76 = vsel %vm74, %v69, 0
    %v79 = vsel %vm74, %v70, 0
    %81 = vmatpush.msra.mxu0 0.0
    %82 = vmatpush.msra.mxu0 0.0
    %83 = vmatpush.msra.mxu0 0.0
    %84 = vmatpush.msra.mxu0 0.0
    %85 = vmatpush.msra.mxu0 0.0
    %86 = vmatpush.msra.mxu0 0.0
    %87 = vmatpush.msra.mxu0 0.0
    %88 = vmatpush.msra.mxu0 0.0
    %89 = vmatpush.msra.mxu0 0.0
    %90 = vmatpush.msra.mxu0 0.0
    %91 = vmatpush.msra.mxu0 0.0
    %92 = vmatpush.msra.mxu0 0.0
    %93 = vmatpush.msra.mxu0 0.0
    %94 = vmatpush.msra.mxu0 0.0
    %95 = vmatpush.msra.mxu0 0.0
    %96 = vmatpush.msra.mxu0 %v73
    %97 = vmatmul.f32.gmra.mxu0 %v76
    %v98 = vpop.f32.mrf.mxu0
    %v99 = vadd.f32 0.0, %v98
    %100 = vmatmul.f32.gmra.mxu0 %v79
    %v101 = vpop.f32.mrf.mxu0
    %v102 = vadd.f32 0.0, %v101
    %103 = vdwg.mxu0
    %vm104 = vcmask 130048
    %v106 = vsel %vm104, %v67, 0
    %v109 = vsel %vm104, %v68, 0
    %111 = vmatpush.msra.mxu0 0.0
    %112 = vmatpush.msra.mxu0 0.0
    %113 = vmatpush.msra.mxu0 0.0
    %114 = vmatpush.msra.mxu0 0.0
    %115 = vmatpush.msra.mxu0 0.0
    %116 = vmatpush.msra.mxu0 0.0
    %117 = vmatpush.msra.mxu0 0.0
    %118 = vmatpush.msra.mxu0 0.0
    %119 = vmatpush.msra.mxu0 0.0
    %120 = vmatpush.msra.mxu0 0.0
    %121 = vmatpush.msra.mxu0 0.0
    %122 = vmatpush.msra.mxu0 0.0
    %123 = vmatpush.msra.mxu0 0.0
    %124 = vmatpush.msra.mxu0 0.0
    %125 = vmatpush.msra.mxu0 %v72
    %126 = vmatpush.msra.mxu0 %v71
    %127 = vmatmul.f32.gmra.mxu0 %v106
    %v128 = vpop.f32.mrf.mxu0
    %v129 = vadd.f32 %v99, %v128
    %130 = vmatmul.f32.gmra.mxu0 %v109
    %v131 = vpop.f32.mrf.mxu0
    %v132 = vadd.f32 %v102, %v131
    %133 = vdwg.mxu0
    %v134 = vld [vmem:[%s4] sm:$0x1]
    %v136 = vperm.slane %v134, 0
    %v138 = vadd.f32 %v129, %v136
    %v139 = vadd.f32 %v132, %v136
    %v140 = vmax.f32 %v138, 0.0
    %v141 = vmax.f32 %v139, 0.0
    %v142 = vld [vmem:[#allocation6] sm:$0xff]
    %v143 = vld [vmem:[#allocation6 + $0x8] sm:$0xff]
    %v144 = vld [vmem:[#allocation6 + $0x10] sm:$0xff]
    %v145 = vld [vmem:[#allocation6 + $0x18] sm:$0xff]
    %v146 = vld [vmem:[#allocation6 + $0x20] sm:$0xff]
    %v147 = vld [vmem:[#allocation6 + $0x28] sm:$0xff]
    %v148 = vld [vmem:[#allocation6 + $0x30] sm:$0xff]
    %v149 = vld [vmem:[#allocation6 + $0x38] sm:$0xff]
    %v150 = vld [vmem:[#allocation6 + $0x40] sm:$0xff]
    %v151 = vld [vmem:[#allocation6 + $0x48] sm:$0xff]
    %v152 = vld [vmem:[#allocation6 + $0x50] sm:$0xff]
    %v153 = vld [vmem:[#allocation6 + $0x58] sm:$0xff]
    %v154 = vld [vmem:[#allocation6 + $0x60] sm:$0xff]
    %v155 = vld [vmem:[#allocation6 + $0x68] sm:$0xff]
    %v156 = vld [vmem:[#allocation6 + $0x70] sm:$0xff]
    %v157 = vld [vmem:[#allocation6 + $0x78] sm:$0xff]
    %v158 = vld [vmem:[%s6] sm:$0x1]
    %v160 = vperm.slane %v158, 0
    %162 = vmatpush.msra.mxu0 %v157
    %163 = vmatpush.msra.mxu0 %v156
    %164 = vmatpush.msra.mxu0 %v155
    %165 = vmatpush.msra.mxu0 %v154
    %166 = vmatpush.msra.mxu0 %v153
    %167 = vmatpush.msra.mxu0 %v152
    %168 = vmatpush.msra.mxu0 %v151
    %169 = vmatpush.msra.mxu0 %v150
    %170 = vmatpush.msra.mxu0 %v149
    %171 = vmatpush.msra.mxu0 %v148
    %172 = vmatpush.msra.mxu0 %v147
    %173 = vmatpush.msra.mxu0 %v146
    %174 = vmatpush.msra.mxu0 %v145
    %175 = vmatpush.msra.mxu0 %v144
    %176 = vmatpush.msra.mxu0 %v143
    %177 = vmatpush.msra.mxu0 %v142
    %178 = vmatmul.f32.gmra.mxu0 %v140
    %v179 = vpop.f32.mrf.mxu0
    %v180 = vadd.f32 %v160, %v179
    %181 = vmatmul.f32.gmra.mxu0 %v141
    %v182 = vpop.f32.mrf.mxu0
    %v183 = vadd.f32 %v160, %v182
    %184 = vdwg.mxu0
    %v185 = vmax.f32 %v180, 0.0
    %v186 = vmax.f32 %v183, 0.0
    %v187 = vld [vmem:[%s7] sm:$0x1]
    %v188 = vld [vmem:[#allocation2] sm:$0x1]
    %190 = vset.pattern.permute.xlu0 0
    %191 = vperm.xlu0 %190, %v188
    %v192 = vpop.permute.xlu0 %191
    %v194 = vperm.slane %v192, 0
    %195 = vmatpush.xpose.msra.mxu0 0.0
    %196 = vmatpush.xpose.msra.mxu0 0.0
    %197 = vmatpush.xpose.msra.mxu0 0.0
    %198 = vmatpush.xpose.msra.mxu0 0.0
    %199 = vmatpush.xpose.msra.mxu0 0.0
    %200 = vmatpush.xpose.msra.mxu0 0.0
    %201 = vmatpush.xpose.msra.mxu0 0.0
    %202 = vmatpush.xpose.msra.mxu0 0.0
    %203 = vmatpush.xpose.msra.mxu0 0.0
    %204 = vmatpush.xpose.msra.mxu0 0.0
    %205 = vmatpush.xpose.msra.mxu0 0.0
    %206 = vmatpush.xpose.msra.mxu0 0.0
    %207 = vmatpush.xpose.msra.mxu0 0.0
    %208 = vmatpush.xpose.msra.mxu0 0.0
    %209 = vmatpush.xpose.msra.mxu0 %v186
    %210 = vmatpush.xpose.msra.mxu0 %v185
    %211 = vmatmul.f32.gmra.mxu0 %v187
    %v212 = vpop.f32.mrf.mxu0
    %v213 = vadd.f32 %v194, %v212
    %214 = vdwg.mxu0
    %vm215 = vcmask 122880
    %216 = vst.msk [vmem:[#allocation8] sm:$0x1] %vm215, %v213
    // Predicated region
    $region46: #{tpu_custom_call.1} parent=1 // pred_check
      _
    $region47: #{tpu_custom_call.1} parent=1 // pred_check_branch
      %218 = sbr.rel (0) target = $region49
    $region48: #{tpu_custom_call.1} parent=1 // pred_region
      %220 = vsyncadd [#allocation5], 0
      %s222 = sshll.u32 [#allocation8], 4
      %s223 = int_to_ptr.vmem [resolvable:$true] %s222
      %s224 = sshll.u32 %s9, 4
      %s225 = int_to_ptr.hbm [resolvable:$true] %s224
      %227 = dma.vmem_to_hbm [thread:$0]  %s223, 16, %s225, [#allocation5]
    $region49: #{tpu_custom_call.1} parent=1 // pred_fallthru
      _
    // Predicated region
    $region50: #{tpu_custom_call.1} parent=1 // pred_check
      _
    $region51: #{tpu_custom_call.1} parent=1 // pred_check_branch
      %229 = sbr.rel (0) target = $region53
    $region52: #{tpu_custom_call.1} parent=1 // pred_region
      %231 = dma.done [#allocation5], 16
    $region53: #{tpu_custom_call.1} parent=1 // pred_fallthru
      _
    %232 = vsyncpa [#allocation4], 1
    %233 = vsyncpa [#allocation7], 1
    %234 = vsyncpa [#allocation5], 1

</llo_original>
